<compile_context>
chip_gen: v7x
topology: tpu7x:2x2x1
jax: 0.10.0
libtpu: 0.0.40
codegen_flags: <defaults>
</compile_context>

<pallas_src>
import math

import jax
import jax.numpy as jnp
from jax.experimental import pallas as pl
from jax.experimental.pallas import tpu as pltpu

_INV_SQRT2 = 1.0 / math.sqrt(2.0)


def _round_up(x, m):
    return ((x + m - 1) // m) * m


def _make_expert_mlp_kernel(use_acc_scratch, ff_chunk, n_chunks, approximate_gelu):
    """Build the kernel body for one grid step = (expert i, token tile t, ff tile k)."""

    def _gelu(hid):
        if approximate_gelu:
            return jax.nn.gelu(hid, approximate=True)
        # nn.GELU() default = exact erf formulation, computed in f32.
        return 0.5 * hid * (1.0 + jax.lax.erf(hid * _INV_SQRT2))

    def _body(x_ref, w1_ref, b1_ref, w2_ref, b2_ref, acc_ref):
        kff = pl.program_id(2)

        @pl.when(kff == 0)
        def _init():
            # Fold the second bias into the accumulator once per token tile.
            acc_ref[...] = jnp.broadcast_to(
                b2_ref[...].astype(jnp.float32), acc_ref.shape
            ).astype(acc_ref.dtype)

        x = x_ref[...]
        # Static ff sub-chunking: matmul1 -> GELU -> matmul2-accumulate per chunk,
        # so the scheduler can overlap GELU of chunk j+1 with matmul2 of chunk j
        # and the peak (tn, tf) f32 intermediate stays small.
        for c in range(n_chunks):
            lo = c * ff_chunk
            hi = lo + ff_chunk
            hid = jnp.dot(x, w1_ref[:, lo:hi], preferred_element_type=jnp.float32)
            hid = hid + b1_ref[:, lo:hi].astype(jnp.float32)
            act = _gelu(hid)
            # TODO(synk): nn.Dropout with drop_rate>0 (training mode) not implemented;
            # p=0 / eval => identity.
            upd = jnp.dot(act.astype(x.dtype), w2_ref[lo:hi, :],
                          preferred_element_type=jnp.float32)
            acc_ref[...] += upd.astype(acc_ref.dtype)

        return kff

    if use_acc_scratch:
        def kernel(x_ref, w1_ref, b1_ref, w2_ref, b2_ref, o_ref, acc_ref):
            kff = _body(x_ref, w1_ref, b1_ref, w2_ref, b2_ref, acc_ref)

            @pl.when(kff == pl.num_programs(2) - 1)
            def _store():
                o_ref[...] = acc_ref[...].astype(o_ref.dtype)
    else:
        # f32 output: accumulate directly in the resident output tile.
        def kernel(x_ref, w1_ref, b1_ref, w2_ref, b2_ref, o_ref):
            _body(x_ref, w1_ref, b1_ref, w2_ref, b2_ref, o_ref)

    return kernel


def _vmem_limit_default():
    try:
        cap = int(pltpu.get_tpu_info().vmem_capacity_bytes)
    except Exception:
        cap = 64 * 1024 * 1024  # conservative: v7x per-TensorCore VMEM
    # ~84% of physical: ~107 MiB on v5e/v6e (128 MiB), ~53 MiB on v7x (64 MiB/TC).
    return max(32 * 1024 * 1024, int(cap * 0.84))


def tp_experts_forward(inputs, w1, b1, w2, b2, *,
                       compute_dtype=jnp.bfloat16,
                       tn_target=None, tf_target=None,
                       approximate_gelu=False,
                       vmem_limit_bytes=None):
    """JAX/Pallas equivalent of TPExperts.forward (inference, dropout p=0).

    inputs : (seq, num_experts, d_model)
    w1     : (num_experts, d_model, p_ff)     b1 : (num_experts, 1, p_ff)
    w2     : (num_experts, p_ff, d_model)     b2 : (num_experts, 1, d_model)

    compute_dtype (default bf16): dtype used to feed the MXU (x, w1, w2 and the
    GELU output are cast to it).  Accumulation, GELU math, bias adds and the
    returned dtype stay f32 / inputs.dtype.  Pass jnp.float32 for exact parity.
    """
    e = inputs.shape[1]
    h = inputs.shape[-1]
    p_ff = w1.shape[-1]
    out_dtype = inputs.dtype

    # transpose(0, 1) + reshape(e, -1, h), exactly like the PyTorch forward.
    x = jnp.swapaxes(inputs, 0, 1)
    inshape = x.shape
    x = x.reshape(e, -1, h)
    n = x.shape[1]

    if compute_dtype is None:
        compute_dtype = x.dtype
    if x.dtype != compute_dtype:
        x = x.astype(compute_dtype)
    if w1.dtype != compute_dtype:
        w1 = w1.astype(compute_dtype)
    if w2.dtype != compute_dtype:
        w2 = w2.astype(compute_dtype)

    cbytes = jnp.dtype(compute_dtype).itemsize
    obytes = jnp.dtype(out_dtype).itemsize
    use_acc_scratch = (out_dtype != jnp.float32)

    if vmem_limit_bytes is None:
        vmem_limit_bytes = _vmem_limit_default()
    budget = int(vmem_limit_bytes * 0.9)

    # --- tile selection -----------------------------------------------------
    tn_align = 16 if cbytes < 4 else 8      # bf16 packs sublanes in pairs
    if tn_target is None:
        # Larger token tile => weight HBM traffic divided by (n / tn).
        tn_target = 512 if cbytes < 4 else 256
    if tf_target is None:
        tf_target = 1024 if cbytes < 4 else 512

    tn = min(_round_up(tn_target, tn_align), _round_up(n, tn_align))
    tf = min(_round_up(tf_target, 128), _round_up(p_ff, 128))

    def footprint(tn_, tf_):
        byts = 2 * tn_ * h * cbytes                 # x tile (double-buffered)
        byts += 2 * (h * tf_ + tf_ * h) * cbytes    # w1 + w2 panels
        byts += 2 * (tf_ + h) * cbytes              # b1 + b2
        byts += 2 * tn_ * h * obytes                # out tile
        if use_acc_scratch:
            byts += tn_ * h * 4                     # f32 accumulator
        return byts

    # Shrink the ff panel first (keeps token-tile weight reuse), then tn.
    while footprint(tn, tf) > budget:
        if tf > 256:
            tf = max(256, _round_up(tf // 2, 128))
        elif tn > 2 * tn_align:
            tn = max(tn_align, _round_up(tn // 2, tn_align))
        elif tf > 128:
            tf = 128
        else:
            break

    # v7x megacore: make sure the 'parallel' extent e * token_tiles is >= 2 so
    # the second TensorCore is not idle (no-op on single-TC v5e/v6e).
    if e * (-(-n // tn)) < 2 and tn > tn_align:
        tn = max(tn_align, _round_up(tn // 2, tn_align))

    # Pad token / ff dims to exact tile multiples.  Padded token rows are sliced
    # off at the end; padded ff columns have zero weights/bias and contribute 0.
    n_pad = _round_up(n, tn)
    f_pad = _round_up(p_ff, tf)
    if n_pad != n:
        x = jnp.pad(x, ((0, 0), (0, n_pad - n), (0, 0)))
    if f_pad != p_ff:
        w1 = jnp.pad(w1, ((0, 0), (0, 0), (0, f_pad - p_ff)))
        b1 = jnp.pad(b1, ((0, 0), (0, 0), (0, f_pad - p_ff)))
        w2 = jnp.pad(w2, ((0, 0), (0, f_pad - p_ff), (0, 0)))

    grid = (e, n_pad // tn, f_pad // tf)

    # Inner ff sub-chunk size (tf is always a multiple of 128 here).
    if tf <= 256:
        ff_chunk = tf
    elif tf % 256 == 0:
        ff_chunk = 256
    else:
        ff_chunk = 128
    n_chunks = tf // ff_chunk

    kernel = _make_expert_mlp_kernel(use_acc_scratch, ff_chunk, n_chunks,
                                     approximate_gelu)

    in_specs = [
        # x token tile: independent of k -> resident in VMEM across ff steps.
        pl.BlockSpec((None, tn, h), lambda i, t, k: (i, t, 0)),
        # Streamed weight / bias panels along the ff axis.
        pl.BlockSpec((None, h, tf), lambda i, t, k: (i, 0, k)),   # w1
        pl.BlockSpec((None, 1, tf), lambda i, t, k: (i, 0, k)),   # b1
        pl.BlockSpec((None, tf, h), lambda i, t, k: (i, k, 0)),   # w2
        pl.BlockSpec((None, 1, h),  lambda i, t, k: (i, 0, 0)),   # b2
    ]
    out_spec = pl.BlockSpec((None, tn, h), lambda i, t, k: (i, t, 0))
    scratch = [pltpu.VMEM((tn, h), jnp.float32)] if use_acc_scratch else []

    out = pl.pallas_call(
        kernel,
        out_shape=jax.ShapeDtypeStruct((e, n_pad, h), out_dtype),
        grid_spec=pltpu.PrefetchScalarGridSpec(
            num_scalar_prefetch=0,
            grid=grid,
            in_specs=in_specs,
            out_specs=out_spec,
            scratch_shapes=scratch,
        ),
        compiler_params=pltpu.CompilerParams(
            dimension_semantics=("parallel", "parallel", "arbitrary"),
            vmem_limit_bytes=int(vmem_limit_bytes),
        ),
    )(x, w1, b1, w2, b2)

    if n_pad != n:
        out = out[:, :n, :]
    out = out.reshape(inshape)
    return jnp.swapaxes(out, 0, 1)


def init_tp_experts_params(key, num_experts, d_model, d_ff, model_parallel_size=1,
                           dtype=jnp.float32):
    """Deterministic synthetic init mirroring TPExperts.__init__ shapes.

    trunc_normal_(std=s) is approximated by a plain normal * std (the +/-2
    absolute bounds are many sigmas away for these tiny stds).
    """
    assert d_ff % model_parallel_size == 0
    p_ff = d_ff // model_parallel_size
    s1 = math.sqrt(0.1 / d_model)
    s2 = math.sqrt(0.1 / d_ff)
    k1, k2, k3, k4 = jax.random.split(key, 4)
    w1 = (jax.random.normal(k1, (num_experts, d_model, p_ff)) * s1).astype(dtype)
    b1 = (jax.random.normal(k2, (num_experts, 1, p_ff)) * s1).astype(dtype)
    w2 = (jax.random.normal(k3, (num_experts, p_ff, d_model)) * s2).astype(dtype)
    b2 = (jax.random.normal(k4, (num_experts, 1, d_model)) * s2).astype(dtype)
    return w1, b1, w2, b2


def _reference(inputs, w1, b1, w2, b2):
    """Pure-JAX fp32 reference matching the PyTorch forward (exact-erf GELU, p=0)."""
    xr = jnp.swapaxes(inputs, 0, 1)                           # (e, seq, h)
    hid = jnp.einsum("enh,ehf->enf", xr, w1) + b1
    act = 0.5 * hid * (1.0 + jax.lax.erf(hid * _INV_SQRT2))
    out = jnp.einsum("enf,efh->enh", act, w2) + b2
    return jnp.swapaxes(out, 0, 1)


if __name__ == "__main__":
    # --- case 1: nicely shaped ----------------------------------------------
    num_experts = 2
    d_model = 32
    d_ff = 64            # model_parallel_size = 1  =>  p_ff = 64
    seq = 8              # tokens per expert

    key = jax.random.PRNGKey(0)
    kx, kp, kx2, kp2 = jax.random.split(key, 4)

    inputs = jax.random.normal(kx, (seq, num_experts, d_model), dtype=jnp.float32)
    w1, b1, w2, b2 = init_tp_experts_params(kp, num_experts, d_model, d_ff)
    ref = _reference(inputs, w1, b1, w2, b2)

    # Default path: bf16 MXU feed, f32 accumulation, f32 output.
    out = jax.block_until_ready(tp_experts_forward(inputs, w1, b1, w2, b2))
    assert out.shape == inputs.shape and out.dtype == inputs.dtype
    assert jnp.allclose(out, ref, atol=3e-2, rtol=3e-2)

    # Exact-parity f32 path.
    out_f32 = jax.block_until_ready(
        tp_experts_forward(inputs, w1, b1, w2, b2, compute_dtype=jnp.float32))
    assert jnp.allclose(out_f32, ref, atol=1e-4, rtol=1e-4)

    # --- case 2: awkward shapes (exercise token / p_ff padding) --------------
    e2, d_model2, d_ff2, seq2 = 1, 24, 96, 5   # n=5 not %8, p_ff=96 not %128
    inputs2 = jax.random.normal(kx2, (seq2, e2, d_model2), dtype=jnp.float32)
    w1b, b1b, w2b, b2b = init_tp_experts_params(kp2, e2, d_model2, d_ff2)
    ref2 = _reference(inputs2, w1b, b1b, w2b, b2b)
    out2 = jax.block_until_ready(
        tp_experts_forward(inputs2, w1b, b1b, w2b, b2b, compute_dtype=jnp.float32))
    assert out2.shape == inputs2.shape
    assert jnp.allclose(out2, ref2, atol=1e-4, rtol=1e-4)

    print("KERNEL_OK")
</pallas_src>

<mosaic_0001>
module attributes {stable_mosaic.version = 11 : i64} {
  func.func @kernel(%arg0: i32, %arg1: i32, %arg2: i32, %arg3: memref<1x16x32xbf16, #tpu.memory_space<vmem>>, %arg4: memref<1x32x128xbf16, #tpu.memory_space<vmem>>, %arg5: memref<1x1x128xf32, #tpu.memory_space<vmem>>, %arg6: memref<1x128x32xbf16, #tpu.memory_space<vmem>>, %arg7: memref<1x1x32xf32, #tpu.memory_space<vmem>>, %arg8: memref<1x16x32xf32, #tpu.memory_space<vmem>>) attributes {dimension_semantics = [#tpu.dimension_semantics<parallel>, #tpu.dimension_semantics<parallel>, #tpu.dimension_semantics<arbitrary>], iteration_bounds = array<i64: 2, 1, 1>, scalar_prefetch = 0 : i64, scratch_operands = 0 : i64, tpu.core_type = #tpu.core_type<tc>, window_params = [{transform_indices = @transform_0, window_bounds = array<i64: 1, 16, 32>}, {transform_indices = @transform_1, window_bounds = array<i64: 1, 32, 128>}, {transform_indices = @transform_2, window_bounds = array<i64: 1, 1, 128>}, {transform_indices = @transform_3, window_bounds = array<i64: 1, 128, 32>}, {transform_indices = @transform_4, window_bounds = array<i64: 1, 1, 32>}, {transform_indices = @transform_5, window_bounds = array<i64: 1, 16, 32>}]} {
    %c0_i32 = arith.constant 0 : i32
    %0 = arith.cmpi eq, %arg2, %c0_i32 : i32
    %1 = arith.extui %0 : i1 to i32
    %c0_i32_0 = arith.constant 0 : i32
    %2 = arith.cmpi ne, %1, %c0_i32_0 : i32
    scf.if %2 {
      %c0_22 = arith.constant 0 : index
      %c0_23 = arith.constant 0 : index
      %c0_24 = arith.constant 0 : index
      %30 = vector.load %arg7[%c0_22, %c0_23, %c0_24] : memref<1x1x32xf32, #tpu.memory_space<vmem>>, vector<1x1x32xf32>
      %31 = vector.shape_cast %30 : vector<1x1x32xf32> to vector<1x32xf32>
      %32 = vector.shape_cast %31 : vector<1x32xf32> to vector<1x32xf32>
      %33 = vector.broadcast %32 : vector<1x32xf32> to vector<16x32xf32>
      %c0_25 = arith.constant 0 : index
      %c0_26 = arith.constant 0 : index
      %c0_27 = arith.constant 0 : index
      %34 = vector.load %arg8[%c0_25, %c0_26, %c0_27] : memref<1x16x32xf32, #tpu.memory_space<vmem>>, vector<1x16x32xf32>
      %35 = vector.shape_cast %34 : vector<1x16x32xf32> to vector<16x32xf32>
      %36 = vector.shape_cast %33 : vector<16x32xf32> to vector<1x16x32xf32>
      tpu.vector_store %arg8[%c0_25, %c0_26, %c0_27], %36 {strides = array<i32>} : memref<1x16x32xf32, #tpu.memory_space<vmem>>, vector<1x16x32xf32>,
    } else {
    }
    %c0 = arith.constant 0 : index
    %c0_1 = arith.constant 0 : index
    %c0_2 = arith.constant 0 : index
    %3 = vector.load %arg3[%c0, %c0_1, %c0_2] : memref<1x16x32xbf16, #tpu.memory_space<vmem>>, vector<1x16x32xbf16>
    %4 = vector.shape_cast %3 : vector<1x16x32xbf16> to vector<16x32xbf16>
    %c0_3 = arith.constant 0 : index
    %c0_4 = arith.constant 0 : index
    %c0_5 = arith.constant 0 : index
    %5 = vector.load %arg4[%c0_3, %c0_4, %c0_5] : memref<1x32x128xbf16, #tpu.memory_space<vmem>>, vector<1x32x128xbf16>
    %6 = vector.shape_cast %5 : vector<1x32x128xbf16> to vector<32x128xbf16>
    %cst = arith.constant dense<0.000000e+00> : vector<16x128xf32>
    %7 = tpu.matmul %4, %6, %cst {dimension_numbers = #tpu.dot_dimension_numbers<[1], [0], [0], [1], [0, 0, 1, 1], [], []>} : vector<16x32xbf16>, vector<32x128xbf16>, vector<16x128xf32> -> vector<16x128xf32>
    %c0_6 = arith.constant 0 : index
    %c0_7 = arith.constant 0 : index
    %c0_8 = arith.constant 0 : index
    %8 = vector.load %arg5[%c0_6, %c0_7, %c0_8] : memref<1x1x128xf32, #tpu.memory_space<vmem>>, vector<1x1x128xf32>
    %9 = vector.shape_cast %8 : vector<1x1x128xf32> to vector<1x128xf32>
    %10 = vector.broadcast %9 : vector<1x128xf32> to vector<16x128xf32>
    %11 = arith.addf %7, %10 : vector<16x128xf32>
    %cst_9 = arith.constant 5.000000e-01 : f32
    %12 = vector.broadcast %cst_9 : f32 to vector<16x128xf32>
    %13 = arith.mulf %12, %11 : vector<16x128xf32>
    %cst_10 = arith.constant 0.707106769 : f32
    %14 = vector.broadcast %cst_10 : f32 to vector<16x128xf32>
    %15 = arith.mulf %11, %14 : vector<16x128xf32>
    %16 = math.erf %15 : vector<16x128xf32>
    %cst_11 = arith.constant 1.000000e+00 : f32
    %17 = vector.broadcast %cst_11 : f32 to vector<16x128xf32>
    %18 = arith.addf %17, %16 : vector<16x128xf32>
    %19 = arith.mulf %13, %18 : vector<16x128xf32>
    %20 = arith.truncf %19 : vector<16x128xf32> to vector<16x128xbf16>
    %c0_12 = arith.constant 0 : index
    %c0_13 = arith.constant 0 : index
    %c0_14 = arith.constant 0 : index
    %21 = vector.load %arg6[%c0_12, %c0_13, %c0_14] : memref<1x128x32xbf16, #tpu.memory_space<vmem>>, vector<1x128x32xbf16>
    %22 = vector.shape_cast %21 : vector<1x128x32xbf16> to vector<128x32xbf16>
    %cst_15 = arith.constant dense<0.000000e+00> : vector<16x32xf32>
    %23 = tpu.matmul %20, %22, %cst_15 {dimension_numbers = #tpu.dot_dimension_numbers<[1], [0], [0], [1], [0, 0, 1, 1], [], []>} : vector<16x128xbf16>, vector<128x32xbf16>, vector<16x32xf32> -> vector<16x32xf32>
    %c0_16 = arith.constant 0 : index
    %c0_17 = arith.constant 0 : index
    %c0_18 = arith.constant 0 : index
    %24 = vector.load %arg8[%c0_16, %c0_17, %c0_18] : memref<1x16x32xf32, #tpu.memory_space<vmem>>, vector<1x16x32xf32>
    %25 = vector.shape_cast %24 : vector<1x16x32xf32> to vector<16x32xf32>
    %26 = arith.addf %25, %23 : vector<16x32xf32>
    %c0_19 = arith.constant 0 : index
    %c0_20 = arith.constant 0 : index
    %c0_21 = arith.constant 0 : index
    %27 = vector.load %arg8[%c0_19, %c0_20, %c0_21] : memref<1x16x32xf32, #tpu.memory_space<vmem>>, vector<1x16x32xf32>
    %28 = vector.shape_cast %27 : vector<1x16x32xf32> to vector<16x32xf32>
    %29 = vector.shape_cast %26 : vector<16x32xf32> to vector<1x16x32xf32>
    tpu.vector_store %arg8[%c0_19, %c0_20, %c0_21], %29 {strides = array<i32>} : memref<1x16x32xf32, #tpu.memory_space<vmem>>, vector<1x16x32xf32>,
    return
  }
  func.func @transform_0(%arg0: i32, %arg1: i32, %arg2: i32) -> (i32, i32, i32) {
    %c0_i32 = arith.constant 0 : i32
    %c0_i32_0 = arith.constant 0 : i32
    return %arg0, %arg1, %c0_i32 : i32, i32, i32
  }
  func.func @transform_1(%arg0: i32, %arg1: i32, %arg2: i32) -> (i32, i32, i32) {
    %c0_i32 = arith.constant 0 : i32
    %c0_i32_0 = arith.constant 0 : i32
    return %arg0, %c0_i32, %arg2 : i32, i32, i32
  }
  func.func @transform_2(%arg0: i32, %arg1: i32, %arg2: i32) -> (i32, i32, i32) {
    %c0_i32 = arith.constant 0 : i32
    %c0_i32_0 = arith.constant 0 : i32
    return %arg0, %c0_i32, %arg2 : i32, i32, i32
  }
  func.func @transform_3(%arg0: i32, %arg1: i32, %arg2: i32) -> (i32, i32, i32) {
    %c0_i32 = arith.constant 0 : i32
    %c0_i32_0 = arith.constant 0 : i32
    return %arg0, %arg2, %c0_i32 : i32, i32, i32
  }
  func.func @transform_4(%arg0: i32, %arg1: i32, %arg2: i32) -> (i32, i32, i32) {
    %c0_i32 = arith.constant 0 : i32
    %c0_i32_0 = arith.constant 0 : i32
    %c0_i32_1 = arith.constant 0 : i32
    return %arg0, %c0_i32, %c0_i32_0 : i32, i32, i32
  }
  func.func @transform_5(%arg0: i32, %arg1: i32, %arg2: i32) -> (i32, i32, i32) {
    %c0_i32 = arith.constant 0 : i32
    %c0_i32_0 = arith.constant 0 : i32
    return %arg0, %arg1, %c0_i32 : i32, i32, i32
  }
}

</mosaic_0001>

<llo_original>
// kernel: tpu_custom_call.1
$region0: #{tpu_custom_call.1}
  #allocation0 [shape = 'u32[]', space=smem, size = 0x4, offset = 0x4, fixed_abs, tag = 'smem constant byte address 0x4 - core index']
  #allocation1 [shape = 'u32[144,128]{1,0:T(1,128)}', space=vmem, size = 0x12000, scoped, tag = 'internal scratch']
  %s0 = inlined_call_operand.vmem [shape: bf16[2,16,32], index: 0, kind: input, shape index: {}]
  %s1 = inlined_call_operand.vmem [shape: bf16[2,32,128], index: 1, kind: input, shape index: {}]
  %s2 = inlined_call_operand.vmem [shape: f32[2,1,128], index: 2, kind: input, shape index: {}]
  %s3 = inlined_call_operand.vmem [shape: bf16[2,128,32], index: 3, kind: input, shape index: {}]
  %s4 = inlined_call_operand.vmem [shape: f32[2,1,32], index: 4, kind: input, shape index: {}]
  %s5 = inlined_call_operand.hbm [shape: f32[2,16,32], index: 5, kind: output, shape index: {}]
  %s6 = sld [smem:[#allocation0]]
  $region57: #{tpu_custom_call.1} parent=0
    _
  %s8 = ssub.s32 1, %s6
  %s9 = scalar_select 0, %s8, %s6
  $region1: #{tpu_custom_call.1} parent=0
    #allocation2 [shape = 'u8[16384]{0}', space=vmem, size = 0x4000, scoped, tag = 'output window, operand 0']
    #allocation3 [shape = 's32[2]{0}', space=sflag, size = 0x8, scoped, tag = 'scoped memory for tpu_custom_call.1']
    %10 = vsyncpa [#allocation3], 0
    %s11 = scalar_lea.sflag [#allocation3], 1
    %12 = vsyncpa %s11, 0
    loop: start=0, step=1, limit=4
    $region2: #{tpu_custom_call.1} parent=1 // loop_pre_header
      _
    $region3: #{tpu_custom_call.1} parent=1 // loop_header
      %s14 = sphi 0, %s18
      %p15 = scmp.ge.s32.totalorder %s14, 4
      %s21 = sphi 0, %s40
      %s22 = sphi 0, %s36
      %s23 = sphi 0, %s32
      %s24 = sphi 0, %s21
      %s25 = sphi 0, %s22
      %s26 = sphi 0, %s23
      %s27 = sphi 0, %s24
      %s28 = sphi 0, %s25
      %s29 = sphi 0, %s26
      %s45 = sphi 0, %s47
      %s48 = sphi 0, %s45
      %s49 = sphi 0, %s48
      %s65 = sphi 0, %s49
      %s73 = sphi 0, %s75
      %s76 = sphi 0, %s73
      %s77 = sphi 0, %s76
      %s93 = sphi 0, %s77
      %s101 = sphi 0, %s103
      %s104 = sphi 0, %s101
      %s105 = sphi 0, %s104
      %s121 = sphi 0, %s105
      %s129 = sphi 0, %s131
      %s132 = sphi 0, %s129
      %s133 = sphi 0, %s132
      %s149 = sphi 0, %s133
      %s155 = sphi 0, %s157
      %s158 = sphi 0, %s155
      %s159 = sphi 0, %s158
      %s175 = sphi 0, %s159
      %s183 = sphi 0, %s185
      %s186 = sphi 0, %s183
      %s187 = sphi 0, %s186
      %s203 = sphi 0, %s187
    $region4: #{tpu_custom_call.1} parent=1 // loop_header_branch
      %17 = sbr.rel (%p15) target = $region8
    $region5: #{tpu_custom_call.1} parent=1 // loop_body
      %s19 = ssub.s32 %s14, 1
      %s20 = ssub.s32 %s14, 2
      %s30 = sadd.s32 1, %s23
      %p31 = scmp.ge.s32.totalorder %s30, 1
      %s32 = scalar_select %p31, 0, %s30
      %s33 = sadd.s32 1, %s22
      %s34 = scalar_select %p31, %s33, %s22
      %p35 = scmp.ge.s32.totalorder %s34, 1
      %s36 = scalar_select %p35, 0, %s34
      %s37 = sadd.s32 1, %s21
      %s38 = scalar_select %p35, %s37, %s21
      %p39 = scmp.ge.s32.totalorder %s38, 2
      %s40 = scalar_select %p39, 0, %s38
      %s41 = ssub.s32 %s21, %s40
      %s42 = ssub.s32 %s22, %s36
      %s43 = sor.u32 %s41, %s42
      %p44 = scmp.eq.s32.totalorder %s43, 0
      %s46 = sadd.s32 %s45, 1
      %s47 = scalar_select %p44, %s45, %s46
      %p50 = pneg %p44
      %p51 = scmp.eq.s32.totalorder %s14, 1
      %p52 = por %p50, %p51
      %p53 = scmp.ne.s32.totalorder %s45, %s48
      %p54 = scmp.eq.s32.totalorder %s14, 0
      %p55 = por %p53, %p54
      %p56 = scmp.ne.s32.totalorder %s45, %s48
      %p57 = scmp.eq.s32.totalorder %s19, 1
      %p58 = por %p56, %p57
      %p59 = scmp.ne.s32.totalorder %s48, %s49
      %p60 = scmp.eq.s32.totalorder %s19, 0
      %p61 = por %p59, %p60
      %p62 = scmp.ne.s32.totalorder %s48, %s49
      %p63 = scmp.eq.s32.totalorder %s20, 1
      %p64 = por %p62, %p63
      %p66 = scmp.ne.s32.totalorder %s49, %s65
      %p67 = scmp.eq.s32.totalorder %s20, 0
      %p68 = por %p66, %p67
      %s69 = ssub.s32 %s21, %s40
      %s70 = ssub.s32 %s23, %s32
      %s71 = sor.u32 %s69, %s70
      %p72 = scmp.eq.s32.totalorder %s71, 0
      %s74 = sadd.s32 %s73, 1
      %s75 = scalar_select %p72, %s73, %s74
      %p78 = pneg %p72
      %p79 = scmp.eq.s32.totalorder %s14, 1
      %p80 = por %p78, %p79
      %p81 = scmp.ne.s32.totalorder %s73, %s76
      %p82 = scmp.eq.s32.totalorder %s14, 0
      %p83 = por %p81, %p82
      %p84 = scmp.ne.s32.totalorder %s73, %s76
      %p85 = scmp.eq.s32.totalorder %s19, 1
      %p86 = por %p84, %p85
      %p87 = scmp.ne.s32.totalorder %s76, %s77
      %p88 = scmp.eq.s32.totalorder %s19, 0
      %p89 = por %p87, %p88
      %p90 = scmp.ne.s32.totalorder %s76, %s77
      %p91 = scmp.eq.s32.totalorder %s20, 1
      %p92 = por %p90, %p91
      %p94 = scmp.ne.s32.totalorder %s77, %s93
      %p95 = scmp.eq.s32.totalorder %s20, 0
      %p96 = por %p94, %p95
      %s97 = ssub.s32 %s21, %s40
      %s98 = ssub.s32 %s23, %s32
      %s99 = sor.u32 %s97, %s98
      %p100 = scmp.eq.s32.totalorder %s99, 0
      %s102 = sadd.s32 %s101, 1
      %s103 = scalar_select %p100, %s101, %s102
      %p106 = pneg %p100
      %p107 = scmp.eq.s32.totalorder %s14, 1
      %p108 = por %p106, %p107
      %p109 = scmp.ne.s32.totalorder %s101, %s104
      %p110 = scmp.eq.s32.totalorder %s14, 0
      %p111 = por %p109, %p110
      %p112 = scmp.ne.s32.totalorder %s101, %s104
      %p113 = scmp.eq.s32.totalorder %s19, 1
      %p114 = por %p112, %p113
      %p115 = scmp.ne.s32.totalorder %s104, %s105
      %p116 = scmp.eq.s32.totalorder %s19, 0
      %p117 = por %p115, %p116
      %p118 = scmp.ne.s32.totalorder %s104, %s105
      %p119 = scmp.eq.s32.totalorder %s20, 1
      %p120 = por %p118, %p119
      %p122 = scmp.ne.s32.totalorder %s105, %s121
      %p123 = scmp.eq.s32.totalorder %s20, 0
      %p124 = por %p122, %p123
      %s125 = ssub.s32 %s21, %s40
      %s126 = ssub.s32 %s23, %s32
      %s127 = sor.u32 %s125, %s126
      %p128 = scmp.eq.s32.totalorder %s127, 0
      %s130 = sadd.s32 %s129, 1
      %s131 = scalar_select %p128, %s129, %s130
      %p134 = pneg %p128
      %p135 = scmp.eq.s32.totalorder %s14, 1
      %p136 = por %p134, %p135
      %p137 = scmp.ne.s32.totalorder %s129, %s132
      %p138 = scmp.eq.s32.totalorder %s14, 0
      %p139 = por %p137, %p138
      %p140 = scmp.ne.s32.totalorder %s129, %s132
      %p141 = scmp.eq.s32.totalorder %s19, 1
      %p142 = por %p140, %p141
      %p143 = scmp.ne.s32.totalorder %s132, %s133
      %p144 = scmp.eq.s32.totalorder %s19, 0
      %p145 = por %p143, %p144
      %p146 = scmp.ne.s32.totalorder %s132, %s133
      %p147 = scmp.eq.s32.totalorder %s20, 1
      %p148 = por %p146, %p147
      %p150 = scmp.ne.s32.totalorder %s133, %s149
      %p151 = scmp.eq.s32.totalorder %s20, 0
      %p152 = por %p150, %p151
      %s153 = ssub.s32 %s21, %s40
      %p154 = scmp.eq.s32.totalorder %s153, 0
      %s156 = sadd.s32 %s155, 1
      %s157 = scalar_select %p154, %s155, %s156
      %p160 = pneg %p154
      %p161 = scmp.eq.s32.totalorder %s14, 1
      %p162 = por %p160, %p161
      %p163 = scmp.ne.s32.totalorder %s155, %s158
      %p164 = scmp.eq.s32.totalorder %s14, 0
      %p165 = por %p163, %p164
      %p166 = scmp.ne.s32.totalorder %s155, %s158
      %p167 = scmp.eq.s32.totalorder %s19, 1
      %p168 = por %p166, %p167
      %p169 = scmp.ne.s32.totalorder %s158, %s159
      %p170 = scmp.eq.s32.totalorder %s19, 0
      %p171 = por %p169, %p170
      %p172 = scmp.ne.s32.totalorder %s158, %s159
      %p173 = scmp.eq.s32.totalorder %s20, 1
      %p174 = por %p172, %p173
      %p176 = scmp.ne.s32.totalorder %s159, %s175
      %p177 = scmp.eq.s32.totalorder %s20, 0
      %p178 = por %p176, %p177
      %s179 = ssub.s32 %s21, %s40
      %s180 = ssub.s32 %s22, %s36
      %s181 = sor.u32 %s179, %s180
      %p182 = scmp.eq.s32.totalorder %s181, 0
      %s184 = sadd.s32 %s183, 1
      %s185 = scalar_select %p182, %s183, %s184
      %p188 = pneg %p182
      %p189 = scmp.eq.s32.totalorder %s14, 1
      %p190 = por %p188, %p189
      %p191 = scmp.ne.s32.totalorder %s183, %s186
      %p192 = scmp.eq.s32.totalorder %s14, 0
      %p193 = por %p191, %p192
      %p194 = scmp.ne.s32.totalorder %s183, %s186
      %p195 = scmp.eq.s32.totalorder %s19, 1
      %p196 = por %p194, %p195
      %p197 = scmp.ne.s32.totalorder %s186, %s187
      %p198 = scmp.eq.s32.totalorder %s19, 0
      %p199 = por %p197, %p198
      %p200 = scmp.ne.s32.totalorder %s186, %s187
      %p201 = scmp.eq.s32.totalorder %s20, 1
      %p202 = por %p200, %p201
      %p204 = scmp.ne.s32.totalorder %s187, %s203
      %p205 = scmp.eq.s32.totalorder %s20, 0
      %p206 = por %p204, %p205
      %p207 = scmp.le.s32.totalorder 1, %s14
      %p208 = scmp.lt.s32.totalorder %s14, 3
      %p209 = pnand %p207, %p208
      %p210 = pneg %p209
      // Predicated region
      $region9: #{tpu_custom_call.1} parent=5 // pred_check
        _
      $region10: #{tpu_custom_call.1} parent=5 // pred_check_branch
        %212 = sbr.rel (%p209) target = $region12
      $region11: #{tpu_custom_call.1} parent=5 // pred_region
        %s213 = ssub.s32 %s14, 1
      $region12: #{tpu_custom_call.1} parent=5 // pred_fallthru
        _
      %p214 = scmp.lt.s32.totalorder %s14, 2
      // Predicated region
      $region13: #{tpu_custom_call.1} parent=5 // pred_check
        %p215 = pneg %p214
      $region14: #{tpu_custom_call.1} parent=5 // pred_check_branch
        %217 = sbr.rel (%p215) target = $region16
      $region15: #{tpu_custom_call.1} parent=5 // pred_region
        // Predicated region
        $region17: #{tpu_custom_call.1} parent=15 // pred_check
          %p218 = pneg %p55
        $region18: #{tpu_custom_call.1} parent=15 // pred_check_branch
          %220 = sbr.rel (%p218) target = $region20
        $region19: #{tpu_custom_call.1} parent=15 // pred_region
          %s221 = smul.u32 2, %s22
          %p222 = scmp.lt.s32.totalorder %s21, 1
          %s223 = scalar_select %p222, %s21, 1
          %p224 = scmp.lt.s32.totalorder %s221, 1
          %s225 = scalar_select %p224, %s221, 1
          %s226 = smul.addr %s223, 2
          %s227 = sadd.s32 %s225, %s226
          %s228 = smul.addr %s227, 4
          %s229 = scalar_lea.vmem %s0, %s228
          %s230 = smul.u32 2, %s22
        $region20: #{tpu_custom_call.1} parent=15 // pred_fallthru
          _
        // Predicated region
        $region21: #{tpu_custom_call.1} parent=15 // pred_check
          %p231 = pneg %p83
        $region22: #{tpu_custom_call.1} parent=15 // pred_check_branch
          %233 = sbr.rel (%p231) target = $region24
        $region23: #{tpu_custom_call.1} parent=15 // pred_region
          %p234 = scmp.lt.s32.totalorder %s21, 1
          %s235 = scalar_select %p234, %s21, 1
          %p236 = scmp.lt.s32.totalorder %s23, 0
          %s237 = scalar_select %p236, %s23, 0
          %s238 = smul.addr %s235, 4
          %s239 = sadd.s32 %s237, %s238
          %s240 = smul.addr %s239, 4
          %s241 = scalar_lea.vmem %s1, %s240
        $region24: #{tpu_custom_call.1} parent=15 // pred_fallthru
          _
        // Predicated region
        $region25: #{tpu_custom_call.1} parent=15 // pred_check
          %p242 = pneg %p111
        $region26: #{tpu_custom_call.1} parent=15 // pred_check_branch
          %244 = sbr.rel (%p242) target = $region28
        $region27: #{tpu_custom_call.1} parent=15 // pred_region
          %p245 = scmp.lt.s32.totalorder %s21, 1
          %s246 = scalar_select %p245, %s21, 1
          %p247 = scmp.lt.s32.totalorder %s23, 0
          %s248 = scalar_select %p247, %s23, 0
          %s249 = sadd.s32 %s248, %s246
          %s250 = scalar_lea.vmem %s2, %s249
        $region28: #{tpu_custom_call.1} parent=15 // pred_fallthru
          _
        // Predicated region
        $region29: #{tpu_custom_call.1} parent=15 // pred_check
          %p251 = pneg %p139
        $region30: #{tpu_custom_call.1} parent=15 // pred_check_branch
          %253 = sbr.rel (%p251) target = $region32
        $region31: #{tpu_custom_call.1} parent=15 // pred_region
          %s254 = smul.u32 16, %s23
          %p255 = scmp.lt.s32.totalorder %s21, 1
          %s256 = scalar_select %p255, %s21, 1
          %p257 = scmp.lt.s32.totalorder %s254, 15
          %s258 = scalar_select %p257, %s254, 15
          %s259 = smul.addr %s256, 16
          %s260 = sadd.s32 %s258, %s259
          %s261 = smul.addr %s260, 4
          %s262 = scalar_lea.vmem %s3, %s261
          %s263 = smul.u32 16, %s23
        $region32: #{tpu_custom_call.1} parent=15 // pred_fallthru
          _
        // Predicated region
        $region33: #{tpu_custom_call.1} parent=15 // pred_check
          %p264 = pneg %p165
        $region34: #{tpu_custom_call.1} parent=15 // pred_check_branch
          %266 = sbr.rel (%p264) target = $region36
        $region35: #{tpu_custom_call.1} parent=15 // pred_region
          %p267 = scmp.lt.s32.totalorder %s21, 1
          %s268 = scalar_select %p267, %s21, 1
          %s269 = scalar_lea.vmem %s4, %s268
        $region36: #{tpu_custom_call.1} parent=15 // pred_fallthru
          _
      $region16: #{tpu_custom_call.1} parent=5 // pred_fallthru
        _
      %p270 = scmp.le.s32.totalorder 1, %s14
      %p271 = scmp.lt.s32.totalorder %s14, 3
      %p272 = pnand %p270, %p271
      %p273 = pneg %p272
      // Predicated region
      $region37: #{tpu_custom_call.1} parent=5 // pred_check
        _
      $region38: #{tpu_custom_call.1} parent=5 // pred_check_branch
        %275 = sbr.rel (%p272) target = $region40
      $region39: #{tpu_custom_call.1} parent=5 // pred_region
        %s276 = ssub.s32 %s14, 1
        %s277 = smul.u32 2, %s25
        %p278 = scmp.lt.s32.totalorder %s24, 1
        %s279 = scalar_select %p278, %s24, 1
        %p280 = scmp.lt.s32.totalorder %s277, 1
        %s281 = scalar_select %p280, %s277, 1
        %s282 = smul.addr %s279, 2
        %s283 = sadd.s32 %s281, %s282
        %s284 = smul.addr %s283, 4
        %s285 = scalar_lea.vmem %s0, %s284
        %p286 = pneg %p61
        %p287 = pneg %p58
        %p288 = scmp.lt.s32.totalorder %s24, 1
        %s289 = scalar_select %p288, %s24, 1
        %p290 = scmp.lt.s32.totalorder %s26, 0
        %s291 = scalar_select %p290, %s26, 0
        %s292 = smul.addr %s289, 4
        %s293 = sadd.s32 %s291, %s292
        %s294 = smul.addr %s293, 4
        %s295 = scalar_lea.vmem %s1, %s294
        %p296 = pneg %p89
        %p297 = pneg %p86
        %p298 = scmp.lt.s32.totalorder %s24, 1
        %s299 = scalar_select %p298, %s24, 1
        %p300 = scmp.lt.s32.totalorder %s26, 0
        %s301 = scalar_select %p300, %s26, 0
        %s302 = sadd.s32 %s301, %s299
        %s303 = scalar_lea.vmem %s2, %s302
        %p304 = pneg %p117
        %p305 = pneg %p114
        %s306 = smul.u32 16, %s26
        %p307 = scmp.lt.s32.totalorder %s24, 1
        %s308 = scalar_select %p307, %s24, 1
        %p309 = scmp.lt.s32.totalorder %s306, 15
        %s310 = scalar_select %p309, %s306, 15
        %s311 = smul.addr %s308, 16
        %s312 = sadd.s32 %s310, %s311
        %s313 = smul.addr %s312, 4
        %s314 = scalar_lea.vmem %s3, %s313
        %p315 = pneg %p145
        %p316 = pneg %p142
        %p317 = scmp.lt.s32.totalorder %s24, 1
        %s318 = scalar_select %p317, %s24, 1
        %s319 = scalar_lea.vmem %s4, %s318
        %p320 = pneg %p171
        %p321 = pneg %p168
        %p322 = pneg %p199
        %p323 = pneg %p196
        %s324 = sand.u32 %s186, 1
        %s325 = scalar_lea.sflag [#allocation3], %s324
        %s326 = sand.u32 %s186, 1
        %s327 = smul.addr %s326, 16
        %s328 = scalar_lea.vmem [#allocation2], %s327
        %s329 = smul.u32 2, %s25
        %p330 = scmp.lt.s32.totalorder %s24, 1
        %s331 = scalar_select %p330, %s24, 1
        %p332 = scmp.lt.s32.totalorder %s329, 1
        %s333 = scalar_select %p332, %s329, 1
        %s334 = smul.addr %s331, 2
        %s335 = sadd.s32 %s333, %s334
        %s336 = smul.addr %s335, 4
        %s337 = scalar_lea.vmem %s0, %s336
        %s338 = smul.u32 2, %s25
        %p339 = scmp.lt.s32.totalorder %s24, 1
        %s340 = scalar_select %p339, %s24, 1
        %p341 = scmp.lt.s32.totalorder %s26, 0
        %s342 = scalar_select %p341, %s26, 0
        %s343 = smul.addr %s340, 4
        %s344 = sadd.s32 %s342, %s343
        %s345 = smul.addr %s344, 4
        %s346 = scalar_lea.vmem %s1, %s345
        %p347 = scmp.lt.s32.totalorder %s24, 1
        %s348 = scalar_select %p347, %s24, 1
        %p349 = scmp.lt.s32.totalorder %s26, 0
        %s350 = scalar_select %p349, %s26, 0
        %s351 = sadd.s32 %s350, %s348
        %s352 = scalar_lea.vmem %s2, %s351
        %s353 = smul.u32 16, %s26
        %p354 = scmp.lt.s32.totalorder %s24, 1
        %s355 = scalar_select %p354, %s24, 1
        %p356 = scmp.lt.s32.totalorder %s353, 15
        %s357 = scalar_select %p356, %s353, 15
        %s358 = smul.addr %s355, 16
        %s359 = sadd.s32 %s357, %s358
        %s360 = smul.addr %s359, 4
        %s361 = scalar_lea.vmem %s3, %s360
        %s362 = smul.u32 16, %s26
        %p363 = scmp.lt.s32.totalorder %s24, 1
        %s364 = scalar_select %p363, %s24, 1
        %s365 = scalar_lea.vmem %s4, %s364
        %s366 = smul.u32 2, %s25
        %p368 = scmp.eq.s32.totalorder %s26, 0
        // Predicated region
        $region41: #{tpu_custom_call.1} parent=39 // pred_check
          %p369 = pneg %p368
        $region42: #{tpu_custom_call.1} parent=39 // pred_check_branch
          %371 = sbr.rel (%p369) target = $region44
        $region43: #{tpu_custom_call.1} parent=39 // pred_region
          %v372 = vld [vmem:[%s365] sm:$0x1]
          %v374 = vlaneseq
          %v375 = vshrl.u32 %v374, 7
          %v376 = vsub.s32 0, %v375
          %v377 = vrot.slane %v372, %v376
          %vm379 = vcmask 261120
          %380 = vst.msk [vmem:[%s328] sm:$0xff] %vm379, %v377
          %381 = vst.msk [vmem:[%s328 + $0x8] sm:$0xff] %vm379, %v377
        $region44: #{tpu_custom_call.1} parent=39 // pred_fallthru
          _
        %v382 = vld [vmem:[%s337] sm:$0xf]
        %v383 = vld [vmem:[%s337 + $0x4] sm:$0xf]
        %v384 = vld [vmem:[%s346] sm:$0xf]
        %v385 = vld [vmem:[%s346 + $0x4] sm:$0xf]
        %v386 = vld [vmem:[%s346 + $0x8] sm:$0xf]
        %v387 = vld [vmem:[%s346 + $0xc] sm:$0xf]
        %v388 = vld [vmem:[%s352] sm:$0x1]
        %v390 = vlaneseq
        %v391 = vshrl.u32 %v390, 7
        %v392 = vsub.s32 0, %v391
        %v393 = vrot.slane %v388, %v392
        %v397 = vunpack.c.l.b16 %v382
        %v398 = vunpack.c.l.b16 %v383
        %v399 = vpack.c.b16 %v398, %v397
        %v404 = vunpack.c.l.b16 %v384
        %v405 = vunpack.c.l.b16 %v385
        %v406 = vunpack.c.l.b16 %v386
        %v407 = vunpack.c.l.b16 %v387
        %v408 = vpack.c.b16 %v405, %v404
        %v409 = vpack.c.b16 %v407, %v406
        %vm412 = vcmask 261120
        %v414 = vsel %vm412, %v399, 0
        %416 = vmatprep.subr.bf16.mxu0 0
        %417 = vmatpush1.bf16.msra.mxu0 %v408
        %418 = vmatprep.subr.bf16.mxu0 0
        %419 = vmatpush1.bf16.msra.mxu0 %v409
        %420 = vmatprep.subr.bf16.mxu0 0
        %421 = vmatpush1.bf16.msra.mxu0 0
        %422 = vmatprep.subr.bf16.mxu0 0
        %423 = vmatpush1.bf16.msra.mxu0 0
        %424 = vmatprep.subr.bf16.mxu0 0
        %425 = vmatpush1.bf16.msra.mxu0 0
        %426 = vmatprep.subr.bf16.mxu0 0
        %427 = vmatpush1.bf16.msra.mxu0 0
        %428 = vmatprep.subr.bf16.mxu0 0
        %429 = vmatpush1.bf16.msra.mxu0 0
        %430 = vmatprep.subr.bf16.mxu0 0
        %431 = vmatpush1.bf16.msra.mxu0 0
        %432 = vmatprep.subr.bf16.mxu0 0
        %433 = vmatpush1.bf16.msra.mxu0 0
        %434 = vmatprep.subr.bf16.mxu0 0
        %435 = vmatpush1.bf16.msra.mxu0 0
        %436 = vmatprep.subr.bf16.mxu0 0
        %437 = vmatpush1.bf16.msra.mxu0 0
        %438 = vmatprep.subr.bf16.mxu0 0
        %439 = vmatpush1.bf16.msra.mxu0 0
        %440 = vmatprep.subr.bf16.mxu0 0
        %441 = vmatpush1.bf16.msra.mxu0 0
        %442 = vmatprep.subr.bf16.mxu0 0
        %443 = vmatpush1.bf16.msra.mxu0 0
        %444 = vmatprep.subr.bf16.mxu0 0
        %445 = vmatpush1.bf16.msra.mxu0 0
        %446 = vmatprep.subr.bf16.mxu0 0
        %447 = vmatpush1.bf16.msra.mxu0 0
        %448 = vmatprep.mubr.bf16.mxu0 0
        %449 = vmatmul.mubr.bf16.gmra.mrb[0].mxu0 %v414
        %v450 = vpop.f32.mrb[0].mxu0
        %v451 = vadd.f32 %v393, %v450
        %v452 = vpop.f32.mrb[0].mxu0
        %v453 = vpop.f32.mrb[0].mxu0
        %v454 = vadd.f32 %v393, %v453
        %v455 = vpop.f32.mrb[0].mxu0
        %456 = vdwg.mxu0
        %v457 = vmul.f32 %v451, 0.5
        %v458 = vmul.f32 %v454, 0.5
        %v459 = vmul.f32 %v451, 0.70710677
        %v460 = vmul.f32 %v454, 0.70710677
        %v461 = verf.f32.pop %v459
        %v462 = verf.f32.pop %v460
        %v463 = vadd.f32 %v461, 1.0
        %v464 = vadd.f32 %v462, 1.0
        %v465 = vmul.f32 %v457, %v463
        %v466 = vmul.f32 %v458, %v464
        %v467 = vpack.c.bf16 %v466, %v465
        %v468 = vld [vmem:[%s361] sm:$0xf]
        %v469 = vld [vmem:[%s361 + $0x4] sm:$0xf]
        %v470 = vld [vmem:[%s361 + $0x8] sm:$0xf]
        %v471 = vld [vmem:[%s361 + $0xc] sm:$0xf]
        %v472 = vld [vmem:[%s361 + $0x10] sm:$0xf]
        %v473 = vld [vmem:[%s361 + $0x14] sm:$0xf]
        %v474 = vld [vmem:[%s361 + $0x18] sm:$0xf]
        %v475 = vld [vmem:[%s361 + $0x1c] sm:$0xf]
        %v476 = vld [vmem:[%s361 + $0x20] sm:$0xf]
        %v477 = vld [vmem:[%s361 + $0x24] sm:$0xf]
        %v478 = vld [vmem:[%s361 + $0x28] sm:$0xf]
        %v479 = vld [vmem:[%s361 + $0x2c] sm:$0xf]
        %v480 = vld [vmem:[%s361 + $0x30] sm:$0xf]
        %v481 = vld [vmem:[%s361 + $0x34] sm:$0xf]
        %v482 = vld [vmem:[%s361 + $0x38] sm:$0xf]
        %v483 = vld [vmem:[%s361 + $0x3c] sm:$0xf]
        %v500 = vunpack.c.l.b16 %v468
        %v501 = vunpack.c.l.b16 %v469
        %v502 = vunpack.c.l.b16 %v470
        %v503 = vunpack.c.l.b16 %v471
        %v504 = vunpack.c.l.b16 %v472
        %v505 = vunpack.c.l.b16 %v473
        %v506 = vunpack.c.l.b16 %v474
        %v507 = vunpack.c.l.b16 %v475
        %v508 = vunpack.c.l.b16 %v476
        %v509 = vunpack.c.l.b16 %v477
        %v510 = vunpack.c.l.b16 %v478
        %v511 = vunpack.c.l.b16 %v479
        %v512 = vunpack.c.l.b16 %v480
        %v513 = vunpack.c.l.b16 %v481
        %v514 = vunpack.c.l.b16 %v482
        %v515 = vunpack.c.l.b16 %v483
        %v516 = vpack.c.b16 %v501, %v500
        %v517 = vpack.c.b16 %v503, %v502
        %v518 = vpack.c.b16 %v505, %v504
        %v519 = vpack.c.b16 %v507, %v506
        %v520 = vpack.c.b16 %v509, %v508
        %v521 = vpack.c.b16 %v511, %v510
        %v522 = vpack.c.b16 %v513, %v512
        %v523 = vpack.c.b16 %v515, %v514
        %532 = vmatprep.subr.bf16.mxu0 0
        %533 = vmatpush1.bf16.msra.mxu0 %v516
        %534 = vmatprep.subr.bf16.mxu0 0
        %535 = vmatpush1.bf16.msra.mxu0 %v517
        %536 = vmatprep.subr.bf16.mxu0 0
        %537 = vmatpush1.bf16.msra.mxu0 %v518
        %538 = vmatprep.subr.bf16.mxu0 0
        %539 = vmatpush1.bf16.msra.mxu0 %v519
        %540 = vmatprep.subr.bf16.mxu0 0
        %541 = vmatpush1.bf16.msra.mxu0 %v520
        %542 = vmatprep.subr.bf16.mxu0 0
        %543 = vmatpush1.bf16.msra.mxu0 %v521
        %544 = vmatprep.subr.bf16.mxu0 0
        %545 = vmatpush1.bf16.msra.mxu0 %v522
        %546 = vmatprep.subr.bf16.mxu0 0
        %547 = vmatpush1.bf16.msra.mxu0 %v523
        %548 = vmatprep.subr.bf16.mxu0 0
        %549 = vmatpush1.bf16.msra.mxu0 0
        %550 = vmatprep.subr.bf16.mxu0 0
        %551 = vmatpush1.bf16.msra.mxu0 0
        %552 = vmatprep.subr.bf16.mxu0 0
        %553 = vmatpush1.bf16.msra.mxu0 0
        %554 = vmatprep.subr.bf16.mxu0 0
        %555 = vmatpush1.bf16.msra.mxu0 0
        %556 = vmatprep.subr.bf16.mxu0 0
        %557 = vmatpush1.bf16.msra.mxu0 0
        %558 = vmatprep.subr.bf16.mxu0 0
        %559 = vmatpush1.bf16.msra.mxu0 0
        %560 = vmatprep.subr.bf16.mxu0 0
        %561 = vmatpush1.bf16.msra.mxu0 0
        %562 = vmatprep.subr.bf16.mxu0 0
        %563 = vmatpush1.bf16.msra.mxu0 0
        %564 = vmatprep.mubr.bf16.mxu0 0
        %565 = vmatmul.mubr.bf16.gmra.mrb[0].mxu0 %v467
        %v566 = vpop.f32.mrb[0].mxu0
        %v567 = vadd.f32 0.0, %v566
        %v568 = vpop.f32.mrb[0].mxu0
        %v569 = vpop.f32.mrb[0].mxu0
        %v570 = vadd.f32 0.0, %v569
        %v571 = vpop.f32.mrb[0].mxu0
        %572 = vdwg.mxu0
        %v573 = vld [vmem:[%s328] sm:$0xff]
        %v574 = vld [vmem:[%s328 + $0x8] sm:$0xff]
        %v575 = vadd.f32 %v573, %v567
        %v576 = vadd.f32 %v574, %v570
        %577 = vst.msk [vmem:[%s328] sm:$0xff] %vm412, %v575
        %578 = vst.msk [vmem:[%s328 + $0x8] sm:$0xff] %vm412, %v576
        %s579 = sand.u32 %s186, 1
        %s580 = scalar_lea.sflag [#allocation3], %s579
        %s581 = sand.u32 %s186, 1
        %s582 = smul.addr %s581, 16
        %s583 = scalar_lea.vmem [#allocation2], %s582
        // Predicated region
        $region45: #{tpu_custom_call.1} parent=39 // pred_check
          %p584 = pneg %p196
        $region46: #{tpu_custom_call.1} parent=39 // pred_check_branch
          %586 = sbr.rel (%p584) target = $region48
        $region47: #{tpu_custom_call.1} parent=39 // pred_region
          %s587 = smul.u32 2, %s25
          %s589 = ssub.s32 256, 256
          %590 = vsyncadd %s580, %s589
          %s591 = smul.addr %s24, 2
          %s592 = sadd.s32 %s587, %s591
          %s593 = smul.addr %s592, 128
          %s594 = scalar_lea.hbm %s5, %s593
          %s595 = sshll.u32 %s583, 4
          %s596 = int_to_ptr.vmem [resolvable:$true] %s595
          %601 = dma.vmem_to_hbm [thread:$0]  %s596, 256, %s594, %s580, 128, 128, 8
        $region48: #{tpu_custom_call.1} parent=39 // pred_fallthru
          _
      $region40: #{tpu_custom_call.1} parent=5 // pred_fallthru
        _
      %p602 = scmp.le.s32.totalorder 2, %s14
      // Predicated region
      $region49: #{tpu_custom_call.1} parent=5 // pred_check
        %p603 = pneg %p602
      $region50: #{tpu_custom_call.1} parent=5 // pred_check_branch
        %605 = sbr.rel (%p603) target = $region52
      $region51: #{tpu_custom_call.1} parent=5 // pred_region
        %s606 = ssub.s32 %s14, 2
        // Predicated region
        $region53: #{tpu_custom_call.1} parent=51 // pred_check
          %p607 = pneg %p202
        $region54: #{tpu_custom_call.1} parent=51 // pred_check_branch
          %609 = sbr.rel (%p607) target = $region56
        $region55: #{tpu_custom_call.1} parent=51 // pred_region
          %s610 = sand.u32 %s187, 1
          %s611 = scalar_lea.sflag [#allocation3], %s610
          %s612 = sand.u32 %s187, 1
          %s613 = smul.addr %s612, 16
          %s614 = scalar_lea.vmem [#allocation2], %s613
          %615 = dma.done %s611, 256
        $region56: #{tpu_custom_call.1} parent=51 // pred_fallthru
          _
      $region52: #{tpu_custom_call.1} parent=5 // pred_fallthru
        _
    $region6: #{tpu_custom_call.1} parent=1 // loop_footer
      %s18 = sadd.s32 1, %s14
    $region7: #{tpu_custom_call.1} parent=1 // loop_footer_branch
      %13 = sbr.rel target = $region3
    $region8: #{tpu_custom_call.1} parent=1 // loop_exit
      _
    %616 = vsyncpa [#allocation3], 1
    %s617 = scalar_lea.sflag [#allocation3], 1
    %618 = vsyncpa %s617, 1

</llo_original>
